<compile_context>
chip_gen: v5e
topology: v5e:2x2
jax: 0.10.0
libtpu: 0.0.40
codegen_flags: <defaults>
</compile_context>

<pallas_src>
import functools

import jax
import jax.numpy as jnp
from jax.experimental import pallas as pl
from jax.experimental.pallas import tpu as pltpu


def _kl_stml_kernel(sf_blk_ref, sg_blk_ref, sf_all_ref, sg_all_ref, out_ref,
                    *, disable_mu, bf16_gram):
    f32 = jnp.float32
    tm, dp = sf_blk_ref.shape
    n = sf_all_ref.shape[0]

    ones_col = jnp.ones((n, 1), f32)        # MXU row-sum helper (hoisted once)
    ones_feat = jnp.ones((1, dp), f32)      # MXU feature-sum helper (hoisted once)

    def rowsum(x):                          # (tm, n) -> (tm, 1) on the MXU
        return jax.lax.dot_general(x, ones_col, (((1,), (0,)), ((), ())),
                                   preferred_element_type=f32)

    def featsum_row(x):                     # (n, dp) -> (1, n) on the MXU
        return jax.lax.dot_general(ones_feat, x, (((1,), (1,)), ((), ())),
                                   preferred_element_type=f32)

    def gram(a, b):                         # (tm, dp) x (n, dp) -> (tm, n), no transpose
        if bf16_gram:
            a = a.astype(jnp.bfloat16)
            b = b.astype(jnp.bfloat16)
        return jax.lax.dot_general(a, b, (((1,), (1,)), ((), ())),
                                   preferred_element_type=f32)

    def normalized_self_dist(blk, full):
        """Euclidean distances rows(blk) vs rows(full), row-mean normalized."""
        if disable_mu:
            eps2 = f32(1e-24)               # (1e-12)^2: matches F.normalize eps
            blk = blk * jax.lax.rsqrt(
                jnp.maximum(jnp.sum(blk * blk, axis=-1, keepdims=True), eps2))
            full = full * jax.lax.rsqrt(
                jnp.maximum(jnp.sum(full * full, axis=-1, keepdims=True), eps2))
        sq_blk = jnp.sum(blk * blk, axis=-1, keepdims=True)         # (tm, 1)
        sq_all = featsum_row(full * full)                           # (1, n)
        g = gram(blk, full)                                         # (tm, n)
        d2 = jnp.maximum(sq_blk + sq_all - 2.0 * g, 0.0)
        dist = jnp.sqrt(d2)
        # dist / mean_j(dist)  ==  dist * (n / rowsum(dist))
        inv_mean = f32(n) * pl.reciprocal(rowsum(dist), approx=False)
        return dist * inv_mean

    sf_blk = sf_blk_ref[...].astype(f32)
    sg_blk = sg_blk_ref[...].astype(f32)
    sf_all = sf_all_ref[...].astype(f32)
    sg_all = sg_all_ref[...].astype(f32)

    s_dist = normalized_self_dist(sf_blk, sf_all)      # (tm, n)
    s_bg_dist = normalized_self_dist(sg_blk, sg_all)   # (tm, n)  (detach: fwd no-op)

    # kl_div(-S_dist, -S_bg_dist, T=1) with the negation folded into the shift:
    #   a_sh = (-S) - max(-S) = min(S) - S,  log_q = a_sh - log(sum exp(a_sh))
    a_sh = jnp.min(s_dist, axis=-1, keepdims=True) - s_dist
    b_sh = jnp.min(s_bg_dist, axis=-1, keepdims=True) - s_bg_dist
    e_a = jnp.exp(a_sh)
    e_b = jnp.exp(b_sh)
    den_a = rowsum(e_a)                                 # (tm, 1)
    den_b = rowsum(e_b)                                 # (tm, 1)
    # sum_j p_j (log p_j - log q_j)
    #   = rowsum(e_b * (b_sh - a_sh)) / den_b + (log den_a - log den_b)
    row_kl = (pl.reciprocal(den_b, approx=False) * rowsum(e_b * (b_sh - a_sh))
              + (jnp.log(den_a) - jnp.log(den_b)))      # (tm, 1)

    # Mask padded rows (global row index >= n) and emit this block's partial
    # sum as a full lane-dense (8,128) tile (unmasked store).
    row_id = (pl.program_id(0) * tm
              + jax.lax.broadcasted_iota(jnp.int32, (tm, 1), 0))
    partial = jnp.sum(jnp.where(row_id < n, row_kl, 0.0))
    out_ref[...] = jnp.broadcast_to(partial, out_ref.shape).astype(out_ref.dtype)


def _round_up(x, m):
    return ((x + m - 1) // m) * m


def kl_stml(s_f, s_g, *, disable_mu=True, temp=1.0, block_rows=None,
            bf16_gram=False):
    """Pallas implementation of KL_STML.forward (temp unused, as in PyTorch)."""
    del temp  # PyTorch forward calls kl_div with T=1 regardless of self.temp.
    n, d = s_f.shape
    assert s_g.shape == (n, d)

    dp = _round_up(d, 128)                       # lane-dense feature dim
    if block_rows is None:
        block_rows = 256                         # fits v5e/v6e/v7x VMEM budgets
    tm = max(8, _round_up(min(block_rows, _round_up(n, 8)), 8))
    nb = pl.cdiv(n, tm)
    n_pad = nb * tm

    def prep(x):
        x = x.astype(jnp.float32)
        full = jnp.pad(x, ((0, 0), (0, dp - d)))          # (n, dp): column operand
        blk = jnp.pad(x, ((0, n_pad - n), (0, dp - d)))   # (nb*tm, dp): row blocks
        return full, blk

    sf_full, sf_blk = prep(s_f)
    sg_full, sg_blk = prep(s_g)

    kernel = functools.partial(_kl_stml_kernel, disable_mu=disable_mu,
                               bf16_gram=bf16_gram)

    # VMEM budget: resident full matrices + double-buffered row blocks + slab temps.
    slab_bytes = 4 * tm * n
    est = 16 * slab_bytes + 4 * 4 * n * dp + 4 * 4 * tm * dp + (1 << 20)
    vmem_limit = int(min(max(est, 32 << 20), 64 << 20))

    partials = pl.pallas_call(
        kernel,
        out_shape=jax.ShapeDtypeStruct((nb, 8, 128), jnp.float32),
        grid=(nb,),
        in_specs=[
            pl.BlockSpec((tm, dp), lambda i: (i, 0)),   # s_f row block
            pl.BlockSpec((tm, dp), lambda i: (i, 0)),   # s_g row block
            pl.BlockSpec((n, dp), lambda i: (0, 0)),    # s_f full (resident)
            pl.BlockSpec((n, dp), lambda i: (0, 0)),    # s_g full (resident)
        ],
        out_specs=pl.BlockSpec((1, 8, 128), lambda i: (i, 0, 0)),
        compiler_params=pltpu.CompilerParams(
            dimension_semantics=("parallel",),
            vmem_limit_bytes=vmem_limit),
    )(sf_blk, sg_blk, sf_full, sg_full)

    return jnp.sum(partials[:, 0, 0]) / jnp.float32(n)


def _kl_stml_ref(s_f, s_g, *, disable_mu=True):
    # Pure-JAX reference mirroring the PyTorch module (for verification).
    if disable_mu:
        s_f = s_f / jnp.maximum(jnp.linalg.norm(s_f, axis=1, keepdims=True), 1e-12)
        s_g = s_g / jnp.maximum(jnp.linalg.norm(s_g, axis=1, keepdims=True), 1e-12)
    n = s_f.shape[0]

    def cdist_norm(x):
        d2 = (jnp.sum(x * x, 1)[:, None] + jnp.sum(x * x, 1)[None, :]
              - 2.0 * x @ x.T)
        dmat = jnp.sqrt(jnp.maximum(d2, 0.0))
        return dmat / jnp.mean(dmat, axis=1, keepdims=True)

    a = -cdist_norm(s_f)
    b = -cdist_norm(s_g)
    log_q = jax.nn.log_softmax(a, axis=-1)
    log_p = jax.nn.log_softmax(b, axis=-1)
    p = jnp.exp(log_p)
    return jnp.sum(p * (log_p - log_q)) / n


if __name__ == "__main__":
    key = jax.random.PRNGKey(0)

    def check(n, d, disable_mu, block_rows=None):
        kf, kg = jax.random.split(jax.random.fold_in(key, n * 1000 + d))
        s_f = jax.random.normal(kf, (n, d), dtype=jnp.float32)
        s_g = jax.random.normal(kg, (n, d), dtype=jnp.float32)
        loss = kl_stml(s_f, s_g, disable_mu=disable_mu, temp=1.0,
                       block_rows=block_rows)
        loss = jax.block_until_ready(loss)
        ref = _kl_stml_ref(s_f, s_g, disable_mu=disable_mu)
        # f32 cancellation on the (mathematically zero) cdist diagonal is
        # amplified by sqrt(); kernel and the XLA reference round it slightly
        # differently, hence the modestly relaxed tolerance on this scalar.
        assert jnp.allclose(loss, ref, rtol=1e-3, atol=1e-4), (n, d, loss, ref)
        return loss

    # Module config from __init__: disable_mu=True, temp=1 (temp unused in fwd).
    check(8, 32, True)                     # demo size: single block
    check(24, 130, True, block_rows=8)     # 3 row blocks + feature-dim padding
    check(13, 32, False, block_rows=8)     # ragged rows (masked) + no-normalize path

    print("KERNEL_OK")
</pallas_src>

<mosaic_0001>
module attributes {stable_mosaic.version = 11 : i64} {
  func.func @_kl_stml_kernel(%arg0: i32, %arg1: memref<8x128xf32, #tpu.memory_space<vmem>>, %arg2: memref<8x128xf32, #tpu.memory_space<vmem>>, %arg3: memref<8x128xf32, #tpu.memory_space<vmem>>, %arg4: memref<8x128xf32, #tpu.memory_space<vmem>>, %arg5: memref<1x8x128xf32, #tpu.memory_space<vmem>>) attributes {dimension_semantics = [#tpu.dimension_semantics<parallel>], iteration_bounds = array<i64: 1>, scalar_prefetch = 0 : i64, scratch_operands = 0 : i64, tpu.core_type = #tpu.core_type<tc>, window_params = [{transform_indices = @transform_0, window_bounds = array<i64: 8, 128>}, {transform_indices = @transform_1, window_bounds = array<i64: 8, 128>}, {pipeline_mode = #tpu.pipeline_mode<synchronous>, transform_indices = @transform_2, window_bounds = array<i64: 8, 128>}, {pipeline_mode = #tpu.pipeline_mode<synchronous>, transform_indices = @transform_3, window_bounds = array<i64: 8, 128>}, {transform_indices = @transform_4, window_bounds = array<i64: 1, 8, 128>}]} {
    %cst = arith.constant 1.000000e+00 : f32
    %0 = vector.broadcast %cst : f32 to vector<8x1xf32>
    %cst_0 = arith.constant 1.000000e+00 : f32
    %1 = vector.broadcast %cst_0 : f32 to vector<1x128xf32>
    %c0 = arith.constant 0 : index
    %c0_1 = arith.constant 0 : index
    %2 = vector.load %arg1[%c0, %c0_1] : memref<8x128xf32, #tpu.memory_space<vmem>>, vector<8x128xf32>
    %c0_2 = arith.constant 0 : index
    %c0_3 = arith.constant 0 : index
    %3 = vector.load %arg2[%c0_2, %c0_3] : memref<8x128xf32, #tpu.memory_space<vmem>>, vector<8x128xf32>
    %c0_4 = arith.constant 0 : index
    %c0_5 = arith.constant 0 : index
    %4 = vector.load %arg3[%c0_4, %c0_5] : memref<8x128xf32, #tpu.memory_space<vmem>>, vector<8x128xf32>
    %c0_6 = arith.constant 0 : index
    %c0_7 = arith.constant 0 : index
    %5 = vector.load %arg4[%c0_6, %c0_7] : memref<8x128xf32, #tpu.memory_space<vmem>>, vector<8x128xf32>
    %6 = arith.mulf %2, %2 : vector<8x128xf32>
    %cst_8 = arith.constant dense<0.000000e+00> : vector<8xf32>
    %7 = vector.multi_reduction <add>, %6, %cst_8 [1] : vector<8x128xf32> to vector<8xf32>
    %8 = vector.shape_cast %7 : vector<8xf32> to vector<8x1xf32>
    %cst_9 = arith.constant 1.000000e-24 : f32
    %9 = vector.broadcast %cst_9 : f32 to vector<8x1xf32>
    %10 = arith.maximumf %8, %9 : vector<8x1xf32>
    %11 = math.rsqrt %10 : vector<8x1xf32>
    %12 = vector.broadcast %11 : vector<8x1xf32> to vector<8x128xf32>
    %13 = arith.mulf %2, %12 : vector<8x128xf32>
    %14 = arith.mulf %4, %4 : vector<8x128xf32>
    %cst_10 = arith.constant dense<0.000000e+00> : vector<8xf32>
    %15 = vector.multi_reduction <add>, %14, %cst_10 [1] : vector<8x128xf32> to vector<8xf32>
    %16 = vector.shape_cast %15 : vector<8xf32> to vector<8x1xf32>
    %cst_11 = arith.constant 1.000000e-24 : f32
    %17 = vector.broadcast %cst_11 : f32 to vector<8x1xf32>
    %18 = arith.maximumf %16, %17 : vector<8x1xf32>
    %19 = math.rsqrt %18 : vector<8x1xf32>
    %20 = vector.broadcast %19 : vector<8x1xf32> to vector<8x128xf32>
    %21 = arith.mulf %4, %20 : vector<8x128xf32>
    %22 = arith.mulf %13, %13 : vector<8x128xf32>
    %cst_12 = arith.constant dense<0.000000e+00> : vector<8xf32>
    %23 = vector.multi_reduction <add>, %22, %cst_12 [1] : vector<8x128xf32> to vector<8xf32>
    %24 = vector.shape_cast %23 : vector<8xf32> to vector<8x1xf32>
    %25 = arith.mulf %21, %21 : vector<8x128xf32>
    %cst_13 = arith.constant dense<0.000000e+00> : vector<1x8xf32>
    %26 = tpu.matmul %1, %25, %cst_13 {dimension_numbers = #tpu.dot_dimension_numbers<[1], [1], [0], [0], [0, 0, 1, 0], [], []>} : vector<1x128xf32>, vector<8x128xf32>, vector<1x8xf32> -> vector<1x8xf32>
    %cst_14 = arith.constant dense<0.000000e+00> : vector<8x8xf32>
    %27 = tpu.matmul %13, %21, %cst_14 {dimension_numbers = #tpu.dot_dimension_numbers<[1], [1], [0], [0], [0, 0, 1, 0], [], []>} : vector<8x128xf32>, vector<8x128xf32>, vector<8x8xf32> -> vector<8x8xf32>
    %28 = vector.broadcast %24 : vector<8x1xf32> to vector<8x8xf32>
    %29 = vector.broadcast %26 : vector<1x8xf32> to vector<8x8xf32>
    %30 = arith.addf %28, %29 : vector<8x8xf32>
    %cst_15 = arith.constant 2.000000e+00 : f32
    %31 = vector.broadcast %cst_15 : f32 to vector<8x8xf32>
    %32 = arith.mulf %31, %27 : vector<8x8xf32>
    %33 = arith.subf %30, %32 : vector<8x8xf32>
    %cst_16 = arith.constant 0.000000e+00 : f32
    %34 = vector.broadcast %cst_16 : f32 to vector<8x8xf32>
    %35 = arith.maximumf %33, %34 : vector<8x8xf32>
    %36 = math.sqrt %35 : vector<8x8xf32>
    %cst_17 = arith.constant dense<0.000000e+00> : vector<8x1xf32>
    %37 = tpu.matmul %36, %0, %cst_17 {dimension_numbers = #tpu.dot_dimension_numbers<[1], [0], [0], [1], [0, 0, 1, 1], [], []>} : vector<8x8xf32>, vector<8x1xf32>, vector<8x1xf32> -> vector<8x1xf32>
    %38 = tpu.reciprocal %37 : vector<8x1xf32> -> vector<8x1xf32>
    %cst_18 = arith.constant 8.000000e+00 : f32
    %39 = vector.broadcast %cst_18 : f32 to vector<8x1xf32>
    %40 = arith.mulf %39, %38 : vector<8x1xf32>
    %41 = vector.broadcast %40 : vector<8x1xf32> to vector<8x8xf32>
    %42 = arith.mulf %36, %41 : vector<8x8xf32>
    %43 = arith.mulf %3, %3 : vector<8x128xf32>
    %cst_19 = arith.constant dense<0.000000e+00> : vector<8xf32>
    %44 = vector.multi_reduction <add>, %43, %cst_19 [1] : vector<8x128xf32> to vector<8xf32>
    %45 = vector.shape_cast %44 : vector<8xf32> to vector<8x1xf32>
    %cst_20 = arith.constant 1.000000e-24 : f32
    %46 = vector.broadcast %cst_20 : f32 to vector<8x1xf32>
    %47 = arith.maximumf %45, %46 : vector<8x1xf32>
    %48 = math.rsqrt %47 : vector<8x1xf32>
    %49 = vector.broadcast %48 : vector<8x1xf32> to vector<8x128xf32>
    %50 = arith.mulf %3, %49 : vector<8x128xf32>
    %51 = arith.mulf %5, %5 : vector<8x128xf32>
    %cst_21 = arith.constant dense<0.000000e+00> : vector<8xf32>
    %52 = vector.multi_reduction <add>, %51, %cst_21 [1] : vector<8x128xf32> to vector<8xf32>
    %53 = vector.shape_cast %52 : vector<8xf32> to vector<8x1xf32>
    %cst_22 = arith.constant 1.000000e-24 : f32
    %54 = vector.broadcast %cst_22 : f32 to vector<8x1xf32>
    %55 = arith.maximumf %53, %54 : vector<8x1xf32>
    %56 = math.rsqrt %55 : vector<8x1xf32>
    %57 = vector.broadcast %56 : vector<8x1xf32> to vector<8x128xf32>
    %58 = arith.mulf %5, %57 : vector<8x128xf32>
    %59 = arith.mulf %50, %50 : vector<8x128xf32>
    %cst_23 = arith.constant dense<0.000000e+00> : vector<8xf32>
    %60 = vector.multi_reduction <add>, %59, %cst_23 [1] : vector<8x128xf32> to vector<8xf32>
    %61 = vector.shape_cast %60 : vector<8xf32> to vector<8x1xf32>
    %62 = arith.mulf %58, %58 : vector<8x128xf32>
    %cst_24 = arith.constant dense<0.000000e+00> : vector<1x8xf32>
    %63 = tpu.matmul %1, %62, %cst_24 {dimension_numbers = #tpu.dot_dimension_numbers<[1], [1], [0], [0], [0, 0, 1, 0], [], []>} : vector<1x128xf32>, vector<8x128xf32>, vector<1x8xf32> -> vector<1x8xf32>
    %cst_25 = arith.constant dense<0.000000e+00> : vector<8x8xf32>
    %64 = tpu.matmul %50, %58, %cst_25 {dimension_numbers = #tpu.dot_dimension_numbers<[1], [1], [0], [0], [0, 0, 1, 0], [], []>} : vector<8x128xf32>, vector<8x128xf32>, vector<8x8xf32> -> vector<8x8xf32>
    %65 = vector.broadcast %61 : vector<8x1xf32> to vector<8x8xf32>
    %66 = vector.broadcast %63 : vector<1x8xf32> to vector<8x8xf32>
    %67 = arith.addf %65, %66 : vector<8x8xf32>
    %cst_26 = arith.constant 2.000000e+00 : f32
    %68 = vector.broadcast %cst_26 : f32 to vector<8x8xf32>
    %69 = arith.mulf %68, %64 : vector<8x8xf32>
    %70 = arith.subf %67, %69 : vector<8x8xf32>
    %cst_27 = arith.constant 0.000000e+00 : f32
    %71 = vector.broadcast %cst_27 : f32 to vector<8x8xf32>
    %72 = arith.maximumf %70, %71 : vector<8x8xf32>
    %73 = math.sqrt %72 : vector<8x8xf32>
    %cst_28 = arith.constant dense<0.000000e+00> : vector<8x1xf32>
    %74 = tpu.matmul %73, %0, %cst_28 {dimension_numbers = #tpu.dot_dimension_numbers<[1], [0], [0], [1], [0, 0, 1, 1], [], []>} : vector<8x8xf32>, vector<8x1xf32>, vector<8x1xf32> -> vector<8x1xf32>
    %75 = tpu.reciprocal %74 : vector<8x1xf32> -> vector<8x1xf32>
    %cst_29 = arith.constant 8.000000e+00 : f32
    %76 = vector.broadcast %cst_29 : f32 to vector<8x1xf32>
    %77 = arith.mulf %76, %75 : vector<8x1xf32>
    %78 = vector.broadcast %77 : vector<8x1xf32> to vector<8x8xf32>
    %79 = arith.mulf %73, %78 : vector<8x8xf32>
    %cst_30 = arith.constant dense<0x7F800000> : vector<8xf32>
    %80 = vector.multi_reduction <minimumf>, %42, %cst_30 [1] : vector<8x8xf32> to vector<8xf32>
    %81 = vector.shape_cast %80 : vector<8xf32> to vector<8x1xf32>
    %82 = vector.broadcast %81 : vector<8x1xf32> to vector<8x8xf32>
    %83 = arith.subf %82, %42 : vector<8x8xf32>
    %cst_31 = arith.constant dense<0x7F800000> : vector<8xf32>
    %84 = vector.multi_reduction <minimumf>, %79, %cst_31 [1] : vector<8x8xf32> to vector<8xf32>
    %85 = vector.shape_cast %84 : vector<8xf32> to vector<8x1xf32>
    %86 = vector.broadcast %85 : vector<8x1xf32> to vector<8x8xf32>
    %87 = arith.subf %86, %79 : vector<8x8xf32>
    %88 = math.exp %83 : vector<8x8xf32>
    %89 = math.exp %87 : vector<8x8xf32>
    %cst_32 = arith.constant dense<0.000000e+00> : vector<8x1xf32>
    %90 = tpu.matmul %88, %0, %cst_32 {dimension_numbers = #tpu.dot_dimension_numbers<[1], [0], [0], [1], [0, 0, 1, 1], [], []>} : vector<8x8xf32>, vector<8x1xf32>, vector<8x1xf32> -> vector<8x1xf32>
    %cst_33 = arith.constant dense<0.000000e+00> : vector<8x1xf32>
    %91 = tpu.matmul %89, %0, %cst_33 {dimension_numbers = #tpu.dot_dimension_numbers<[1], [0], [0], [1], [0, 0, 1, 1], [], []>} : vector<8x8xf32>, vector<8x1xf32>, vector<8x1xf32> -> vector<8x1xf32>
    %92 = tpu.reciprocal %91 : vector<8x1xf32> -> vector<8x1xf32>
    %93 = arith.subf %87, %83 : vector<8x8xf32>
    %94 = arith.mulf %89, %93 : vector<8x8xf32>
    %cst_34 = arith.constant dense<0.000000e+00> : vector<8x1xf32>
    %95 = tpu.matmul %94, %0, %cst_34 {dimension_numbers = #tpu.dot_dimension_numbers<[1], [0], [0], [1], [0, 0, 1, 1], [], []>} : vector<8x8xf32>, vector<8x1xf32>, vector<8x1xf32> -> vector<8x1xf32>
    %96 = arith.mulf %92, %95 : vector<8x1xf32>
    %97 = math.log %90 : vector<8x1xf32>
    %98 = math.log %91 : vector<8x1xf32>
    %99 = arith.subf %97, %98 : vector<8x1xf32>
    %100 = arith.addf %96, %99 : vector<8x1xf32>
    %c8_i32 = arith.constant 8 : i32
    %101 = arith.muli %arg0, %c8_i32 : i32
    %102 = tpu.iota {dimensions = array<i32: 0>} : vector<8x1xi32>
    %103 = vector.broadcast %101 : i32 to vector<8x1xi32>
    %104 = arith.addi %103, %102 : vector<8x1xi32>
    %c8_i32_35 = arith.constant 8 : i32
    %105 = vector.broadcast %c8_i32_35 : i32 to vector<8x1xi32>
    %106 = arith.cmpi slt, %104, %105 : vector<8x1xi32>
    %cst_36 = arith.constant 0.000000e+00 : f32
    %107 = vector.broadcast %cst_36 : f32 to vector<8x1xf32>
    %108 = arith.select %106, %100, %107 : vector<8x1xi1>, vector<8x1xf32>
    %109 = vector.shape_cast %108 : vector<8x1xf32> to vector<1x8x1xf32>
    %cst_37 = arith.constant dense<0.000000e+00> : vector<1xf32>
    %110 = vector.multi_reduction <add>, %109, %cst_37 [1, 2] : vector<1x8x1xf32> to vector<1xf32>
    %111 = vector.shape_cast %110 : vector<1xf32> to vector<1x1x1xf32>
    %112 = vector.extract %111[0, 0, 0] : f32 from vector<1x1x1xf32>
    %113 = vector.broadcast %112 : f32 to vector<1x8x128xf32>
    %c0_38 = arith.constant 0 : index
    %c0_39 = arith.constant 0 : index
    %c0_40 = arith.constant 0 : index
    %114 = vector.load %arg5[%c0_38, %c0_39, %c0_40] : memref<1x8x128xf32, #tpu.memory_space<vmem>>, vector<1x8x128xf32>
    tpu.vector_store %arg5[%c0_38, %c0_39, %c0_40], %113 {strides = array<i32>} : memref<1x8x128xf32, #tpu.memory_space<vmem>>, vector<1x8x128xf32>,
    return
  }
  func.func @transform_0(%arg0: i32) -> (i32, i32) {
    %c0_i32 = arith.constant 0 : i32
    %c0_i32_0 = arith.constant 0 : i32
    return %arg0, %c0_i32 : i32, i32
  }
  func.func @transform_1(%arg0: i32) -> (i32, i32) {
    %c0_i32 = arith.constant 0 : i32
    %c0_i32_0 = arith.constant 0 : i32
    return %arg0, %c0_i32 : i32, i32
  }
  func.func @transform_2(%arg0: i32) -> (i32, i32) {
    %c0_i32 = arith.constant 0 : i32
    %c0_i32_0 = arith.constant 0 : i32
    %c0_i32_1 = arith.constant 0 : i32
    return %c0_i32, %c0_i32_0 : i32, i32
  }
  func.func @transform_3(%arg0: i32) -> (i32, i32) {
    %c0_i32 = arith.constant 0 : i32
    %c0_i32_0 = arith.constant 0 : i32
    %c0_i32_1 = arith.constant 0 : i32
    return %c0_i32, %c0_i32_0 : i32, i32
  }
  func.func @transform_4(%arg0: i32) -> (i32, i32, i32) {
    %c0_i32 = arith.constant 0 : i32
    %c0_i32_0 = arith.constant 0 : i32
    %c0_i32_1 = arith.constant 0 : i32
    return %arg0, %c0_i32, %c0_i32_0 : i32, i32, i32
  }
}

</mosaic_0001>

<llo_original>
// kernel: tpu_custom_call.1
$region0: #{tpu_custom_call.1}
  #allocation0 [shape = 'u32[]', space=smem, size = 0x4, offset = 0x4, fixed_abs, tag = 'smem constant byte address 0x4 - core index']
  #allocation1 [shape = 'u32[72,128]{1,0:T(1,128)}', space=vmem, size = 0x9000, scoped, tag = 'internal scratch']
  %s0 = inlined_call_operand.hbm [shape: f32[8,128], index: 0, kind: input, shape index: {}]
  %s1 = inlined_call_operand.hbm [shape: f32[8,128], index: 1, kind: input, shape index: {}]
  %s2 = inlined_call_operand.hbm [shape: f32[8,128], index: 2, kind: input, shape index: {}]
  %s3 = inlined_call_operand.hbm [shape: f32[8,128], index: 3, kind: input, shape index: {}]
  %s4 = inlined_call_operand.hbm [shape: f32[1,8,128], index: 4, kind: output, shape index: {}]
  %s5 = sld [smem:[#allocation0]]
  $region42: #{tpu_custom_call.1} parent=0
    _
  %s7 = ssub.s32 1, %s5
  %s8 = scalar_select 0, %s7, %s5
  $region1: #{tpu_custom_call.1} parent=0
    #allocation2 [shape = 'u8[4096]{0}', space=vmem, size = 0x1000, scoped, tag = 'input window, operand 0, single buffered']
    #allocation3 [shape = 's32[1]{0}', space=sflag, size = 0x4, scoped, tag = 'scoped memory for tpu_custom_call.1']
    #allocation4 [shape = 's32[1]{0}', space=sflag, size = 0x4, scoped, tag = 'scoped memory for tpu_custom_call.1']
    #allocation5 [shape = 'u8[4096]{0}', space=vmem, size = 0x1000, scoped, tag = 'input window, operand 1, single buffered']
    #allocation6 [shape = 's32[1]{0}', space=sflag, size = 0x4, scoped, tag = 'scoped memory for tpu_custom_call.1']
    #allocation7 [shape = 'u8[4096]{0}', space=vmem, size = 0x1000, scoped, tag = 'input window, operand 2, single buffered']
    #allocation8 [shape = 'u8[4096]{0}', space=vmem, size = 0x1000, scoped, tag = 'input window, operand 3, single buffered']
    #allocation9 [shape = 's32[1]{0}', space=sflag, size = 0x4, scoped, tag = 'scoped memory for tpu_custom_call.1']
    #allocation10 [shape = 'u8[4096]{0}', space=vmem, size = 0x1000, scoped, tag = 'output window, operand 0, single buffered']
    %9 = vsyncpa [#allocation3], 0
    %10 = vsyncpa [#allocation6], 0
    %11 = vsyncpa [#allocation9], 0
    %12 = vsyncpa [#allocation4], 0
    // Predicated region
    $region2: #{tpu_custom_call.1} parent=1 // pred_check
      _
    $region3: #{tpu_custom_call.1} parent=1 // pred_check_branch
      %14 = sbr.rel (0) target = $region5
    $region4: #{tpu_custom_call.1} parent=1 // pred_region
      %16 = vsyncadd [#allocation3], 0
      %s18 = sshll.u32 %s0, 4
      %s19 = int_to_ptr.hbm [resolvable:$true] %s18
      %s20 = sshll.u32 [#allocation2], 4
      %s21 = int_to_ptr.vmem [resolvable:$true] %s20
      %23 = dma.hbm_to_vmem [thread:$0]  %s19, 128, %s21, [#allocation3]
    $region5: #{tpu_custom_call.1} parent=1 // pred_fallthru
      _
    // Predicated region
    $region6: #{tpu_custom_call.1} parent=1 // pred_check
      _
    $region7: #{tpu_custom_call.1} parent=1 // pred_check_branch
      %25 = sbr.rel (0) target = $region9
    $region8: #{tpu_custom_call.1} parent=1 // pred_region
      %27 = vsyncadd [#allocation6], 0
      %s29 = sshll.u32 %s1, 4
      %s30 = int_to_ptr.hbm [resolvable:$true] %s29
      %s31 = sshll.u32 [#allocation5], 4
      %s32 = int_to_ptr.vmem [resolvable:$true] %s31
      %34 = dma.hbm_to_vmem [thread:$0]  %s30, 128, %s32, [#allocation6]
    $region9: #{tpu_custom_call.1} parent=1 // pred_fallthru
      _
    // Predicated region
    $region10: #{tpu_custom_call.1} parent=1 // pred_check
      _
    $region11: #{tpu_custom_call.1} parent=1 // pred_check_branch
      %36 = sbr.rel (0) target = $region13
    $region12: #{tpu_custom_call.1} parent=1 // pred_region
      %38 = vsyncadd [#allocation6], 0
      %s40 = sshll.u32 %s2, 4
      %s41 = int_to_ptr.hbm [resolvable:$true] %s40
      %s42 = sshll.u32 [#allocation7], 4
      %s43 = int_to_ptr.vmem [resolvable:$true] %s42
      %45 = dma.hbm_to_vmem [thread:$0]  %s41, 128, %s43, [#allocation6]
    $region13: #{tpu_custom_call.1} parent=1 // pred_fallthru
      _
    // Predicated region
    $region14: #{tpu_custom_call.1} parent=1 // pred_check
      _
    $region15: #{tpu_custom_call.1} parent=1 // pred_check_branch
      %47 = sbr.rel (0) target = $region17
    $region16: #{tpu_custom_call.1} parent=1 // pred_region
      %49 = vsyncadd [#allocation9], 0
      %s51 = sshll.u32 %s3, 4
      %s52 = int_to_ptr.hbm [resolvable:$true] %s51
      %s53 = sshll.u32 [#allocation8], 4
      %s54 = int_to_ptr.vmem [resolvable:$true] %s53
      %56 = dma.hbm_to_vmem [thread:$0]  %s52, 128, %s54, [#allocation9]
    $region17: #{tpu_custom_call.1} parent=1 // pred_fallthru
      _
    // Predicated region
    $region18: #{tpu_custom_call.1} parent=1 // pred_check
      _
    $region19: #{tpu_custom_call.1} parent=1 // pred_check_branch
      %58 = sbr.rel (0) target = $region21
    $region20: #{tpu_custom_call.1} parent=1 // pred_region
      %60 = dma.done [#allocation3], 128
    $region21: #{tpu_custom_call.1} parent=1 // pred_fallthru
      _
    // Predicated region
    $region22: #{tpu_custom_call.1} parent=1 // pred_check
      _
    $region23: #{tpu_custom_call.1} parent=1 // pred_check_branch
      %62 = sbr.rel (0) target = $region25
    $region24: #{tpu_custom_call.1} parent=1 // pred_region
      %64 = dma.done [#allocation6], 128
    $region25: #{tpu_custom_call.1} parent=1 // pred_fallthru
      _
    // Predicated region
    $region26: #{tpu_custom_call.1} parent=1 // pred_check
      _
    $region27: #{tpu_custom_call.1} parent=1 // pred_check_branch
      %66 = sbr.rel (0) target = $region29
    $region28: #{tpu_custom_call.1} parent=1 // pred_region
      %68 = dma.done [#allocation6], 128
    $region29: #{tpu_custom_call.1} parent=1 // pred_fallthru
      _
    // Predicated region
    $region30: #{tpu_custom_call.1} parent=1 // pred_check
      _
    $region31: #{tpu_custom_call.1} parent=1 // pred_check_branch
      %70 = sbr.rel (0) target = $region33
    $region32: #{tpu_custom_call.1} parent=1 // pred_region
      %72 = dma.done [#allocation9], 128
    $region33: #{tpu_custom_call.1} parent=1 // pred_fallthru
      _
    %v73 = vld [vmem:[#allocation2] sm:$0xff]
    %v74 = vld [vmem:[#allocation5] sm:$0xff]
    %v75 = vld [vmem:[#allocation7] sm:$0xff]
    %v76 = vld [vmem:[#allocation8] sm:$0xff]
    %v77 = vmul.f32 %v73, %v73
    %78 = vadd.xlane.f32.xlu0 %v77
    %v79 = vpop.xlane.xlu0 %78
    %v80 = vmax.f32 %v79, 1e-24
    %v81 = vrsqrt.pop %v80
    %v82 = vmul.f32 %v81, %v80
    %v83 = vmul.f32 %v82, %v81
    %v84 = vmul.f32 0.5, %v83
    %v85 = vsub.f32 1.5, %v84
    %v86 = vmul.f32 %v81, %v85
    %vm87 = vweird.f32 %v80
    %vm88 = vweird.f32 %v81
    %vm89 = vmor %vm87, %vm88
    %v90 = vsel %vm89, %v81, %v86
    %v91 = vmul.f32 %v73, %v90
    %v92 = vmul.f32 %v75, %v75
    %93 = vadd.xlane.f32.xlu0 %v92
    %v94 = vpop.xlane.xlu0 %93
    %v95 = vmax.f32 %v94, 1e-24
    %v96 = vrsqrt.pop %v95
    %v97 = vmul.f32 %v96, %v95
    %v98 = vmul.f32 %v97, %v96
    %v99 = vmul.f32 0.5, %v98
    %v100 = vsub.f32 1.5, %v99
    %v101 = vmul.f32 %v96, %v100
    %vm102 = vweird.f32 %v95
    %vm103 = vweird.f32 %v96
    %vm104 = vmor %vm102, %vm103
    %v105 = vsel %vm104, %v96, %v101
    %v106 = vmul.f32 %v75, %v105
    %v107 = vmul.f32 %v91, %v91
    %108 = vadd.xlane.f32.xlu0 %v107
    %v109 = vpop.xlane.xlu0 %108
    %v110 = vmul.f32 %v106, %v106
    %111 = vmatpush.xpose.msra.mxu0 0.0
    %112 = vmatpush.xpose.msra.mxu0 0.0
    %113 = vmatpush.xpose.msra.mxu0 0.0
    %114 = vmatpush.xpose.msra.mxu0 0.0
    %115 = vmatpush.xpose.msra.mxu0 0.0
    %116 = vmatpush.xpose.msra.mxu0 0.0
    %117 = vmatpush.xpose.msra.mxu0 0.0
    %118 = vmatpush.xpose.msra.mxu0 0.0
    %119 = vmatpush.xpose.msra.mxu0 0.0
    %120 = vmatpush.xpose.msra.mxu0 0.0
    %121 = vmatpush.xpose.msra.mxu0 0.0
    %122 = vmatpush.xpose.msra.mxu0 0.0
    %123 = vmatpush.xpose.msra.mxu0 0.0
    %124 = vmatpush.xpose.msra.mxu0 0.0
    %125 = vmatpush.xpose.msra.mxu0 0.0
    %126 = vmatpush.xpose.msra.mxu0 %v110
    %127 = vmatmul.f32.gmra.mxu0 1.0
    %v128 = vpop.f32.mrf.mxu0
    %v129 = vadd.f32 0.0, %v128
    %130 = vdwg.mxu0
    %131 = vmatpush.xpose.msra.mxu0 0.0
    %132 = vmatpush.xpose.msra.mxu0 0.0
    %133 = vmatpush.xpose.msra.mxu0 0.0
    %134 = vmatpush.xpose.msra.mxu0 0.0
    %135 = vmatpush.xpose.msra.mxu0 0.0
    %136 = vmatpush.xpose.msra.mxu0 0.0
    %137 = vmatpush.xpose.msra.mxu0 0.0
    %138 = vmatpush.xpose.msra.mxu0 0.0
    %139 = vmatpush.xpose.msra.mxu0 0.0
    %140 = vmatpush.xpose.msra.mxu0 0.0
    %141 = vmatpush.xpose.msra.mxu0 0.0
    %142 = vmatpush.xpose.msra.mxu0 0.0
    %143 = vmatpush.xpose.msra.mxu0 0.0
    %144 = vmatpush.xpose.msra.mxu0 0.0
    %145 = vmatpush.xpose.msra.mxu0 0.0
    %146 = vmatpush.xpose.msra.mxu0 %v106
    %147 = vmatmul.f32.gmra.mxu0 %v91
    %v148 = vpop.f32.mrf.mxu0
    %v149 = vadd.f32 0.0, %v148
    %150 = vdwg.mxu0
    %v151 = vperm.slane %v129, 0
    %v152 = vadd.f32 %v109, %v151
    %v153 = vmul.f32 %v149, 2.0
    %v154 = vsub.f32 %v152, %v153
    %v155 = vmax.f32 %v154, 0.0
    %v156 = vrsqrt.pop %v155
    %v157 = vmul.f32 %v156, %v155
    %v158 = vmul.f32 %v157, %v156
    %v159 = vmul.f32 0.5, %v158
    %v160 = vsub.f32 1.5, %v159
    %v161 = vmul.f32 %v156, %v160
    %v162 = vmul.f32 %v155, %v161
    %vm163 = vcmp.eq.f32.partialorder %v155, inf
    %v164 = vsel %vm163, %v155, %v162
    %vm165 = vcmp.eq.f32.partialorder %v155, 0.0
    %v166 = vand.u32 %v155, 2147483648
    %v167 = vsel %vm165, %v166, %v164
    %vm168 = vcmask 64512
    %v170 = vsel %vm168, %v167, 0
    %172 = vmatpush.msra.mxu0 0.0
    %173 = vmatpush.msra.mxu0 0.0
    %174 = vmatpush.msra.mxu0 0.0
    %175 = vmatpush.msra.mxu0 0.0
    %176 = vmatpush.msra.mxu0 0.0
    %177 = vmatpush.msra.mxu0 0.0
    %178 = vmatpush.msra.mxu0 0.0
    %179 = vmatpush.msra.mxu0 0.0
    %180 = vmatpush.msra.mxu0 0.0
    %181 = vmatpush.msra.mxu0 0.0
    %182 = vmatpush.msra.mxu0 0.0
    %183 = vmatpush.msra.mxu0 0.0
    %184 = vmatpush.msra.mxu0 0.0
    %185 = vmatpush.msra.mxu0 0.0
    %186 = vmatpush.msra.mxu0 0.0
    %187 = vmatpush.msra.mxu0 1.0
    %188 = vmatmul.f32.gmra.mxu0 %v170
    %v189 = vpop.f32.mrf.mxu0
    %v190 = vadd.f32 0.0, %v189
    %191 = vdwg.mxu0
    %v192 = vrcp.pop %v190
    %v193 = vmul.f32 %v190, %v192
    %v194 = vsub.f32 1.0, %v193
    %v195 = vmul.f32 %v192, %v194
    %v196 = vadd.f32 %v192, %v195
    %vm197 = vweird.f32 %v190
    %vm198 = vweird.f32 %v192
    %vm199 = vmor %vm197, %vm198
    %v200 = vsel %vm199, %v192, %v196
    %v201 = vand.u32 2147483647, %v190
    %vm202 = vcmp.eq.f32.partialorder %v201, 8.507059e+37
    %v203 = vand.u32 %v190, 2147483648
    %v204 = vor.u32 1.1754944e-38, %v203
    %v205 = vsel %vm202, %v204, %v200
    %v206 = vmul.f32 %v205, 8.0
    %208 = vset.pattern.permute.xlu0 0
    %209 = vperm.xlu0 %208, %v206
    %v210 = vpop.permute.xlu0 %209
    %v212 = vmul.f32 %v167, %v210
    %v213 = vmul.f32 %v74, %v74
    %214 = vadd.xlane.f32.xlu0 %v213
    %v215 = vpop.xlane.xlu0 %214
    %v216 = vmax.f32 %v215, 1e-24
    %v217 = vrsqrt.pop %v216
    %v218 = vmul.f32 %v217, %v216
    %v219 = vmul.f32 %v218, %v217
    %v220 = vmul.f32 0.5, %v219
    %v221 = vsub.f32 1.5, %v220
    %v222 = vmul.f32 %v217, %v221
    %vm223 = vweird.f32 %v216
    %vm224 = vweird.f32 %v217
    %vm225 = vmor %vm223, %vm224
    %v226 = vsel %vm225, %v217, %v222
    %v227 = vmul.f32 %v74, %v226
    %v228 = vmul.f32 %v76, %v76
    %229 = vadd.xlane.f32.xlu0 %v228
    %v230 = vpop.xlane.xlu0 %229
    %v231 = vmax.f32 %v230, 1e-24
    %v232 = vrsqrt.pop %v231
    %v233 = vmul.f32 %v232, %v231
    %v234 = vmul.f32 %v233, %v232
    %v235 = vmul.f32 0.5, %v234
    %v236 = vsub.f32 1.5, %v235
    %v237 = vmul.f32 %v232, %v236
    %vm238 = vweird.f32 %v231
    %vm239 = vweird.f32 %v232
    %vm240 = vmor %vm238, %vm239
    %v241 = vsel %vm240, %v232, %v237
    %v242 = vmul.f32 %v76, %v241
    %v243 = vmul.f32 %v227, %v227
    %244 = vadd.xlane.f32.xlu0 %v243
    %v245 = vpop.xlane.xlu0 %244
    %v246 = vmul.f32 %v242, %v242
    %247 = vmatpush.xpose.msra.mxu0 0.0
    %248 = vmatpush.xpose.msra.mxu0 0.0
    %249 = vmatpush.xpose.msra.mxu0 0.0
    %250 = vmatpush.xpose.msra.mxu0 0.0
    %251 = vmatpush.xpose.msra.mxu0 0.0
    %252 = vmatpush.xpose.msra.mxu0 0.0
    %253 = vmatpush.xpose.msra.mxu0 0.0
    %254 = vmatpush.xpose.msra.mxu0 0.0
    %255 = vmatpush.xpose.msra.mxu0 0.0
    %256 = vmatpush.xpose.msra.mxu0 0.0
    %257 = vmatpush.xpose.msra.mxu0 0.0
    %258 = vmatpush.xpose.msra.mxu0 0.0
    %259 = vmatpush.xpose.msra.mxu0 0.0
    %260 = vmatpush.xpose.msra.mxu0 0.0
    %261 = vmatpush.xpose.msra.mxu0 0.0
    %262 = vmatpush.xpose.msra.mxu0 %v246
    %263 = vmatmul.f32.gmra.mxu0 1.0
    %v264 = vpop.f32.mrf.mxu0
    %v265 = vadd.f32 0.0, %v264
    %266 = vdwg.mxu0
    %267 = vmatpush.xpose.msra.mxu0 0.0
    %268 = vmatpush.xpose.msra.mxu0 0.0
    %269 = vmatpush.xpose.msra.mxu0 0.0
    %270 = vmatpush.xpose.msra.mxu0 0.0
    %271 = vmatpush.xpose.msra.mxu0 0.0
    %272 = vmatpush.xpose.msra.mxu0 0.0
    %273 = vmatpush.xpose.msra.mxu0 0.0
    %274 = vmatpush.xpose.msra.mxu0 0.0
    %275 = vmatpush.xpose.msra.mxu0 0.0
    %276 = vmatpush.xpose.msra.mxu0 0.0
    %277 = vmatpush.xpose.msra.mxu0 0.0
    %278 = vmatpush.xpose.msra.mxu0 0.0
    %279 = vmatpush.xpose.msra.mxu0 0.0
    %280 = vmatpush.xpose.msra.mxu0 0.0
    %281 = vmatpush.xpose.msra.mxu0 0.0
    %282 = vmatpush.xpose.msra.mxu0 %v242
    %283 = vmatmul.f32.gmra.mxu0 %v227
    %v284 = vpop.f32.mrf.mxu0
    %v285 = vadd.f32 0.0, %v284
    %286 = vdwg.mxu0
    %v287 = vperm.slane %v265, 0
    %v288 = vadd.f32 %v245, %v287
    %v289 = vmul.f32 %v285, 2.0
    %v290 = vsub.f32 %v288, %v289
    %v291 = vmax.f32 %v290, 0.0
    %v292 = vrsqrt.pop %v291
    %v293 = vmul.f32 %v292, %v291
    %v294 = vmul.f32 %v293, %v292
    %v295 = vmul.f32 0.5, %v294
    %v296 = vsub.f32 1.5, %v295
    %v297 = vmul.f32 %v292, %v296
    %v298 = vmul.f32 %v291, %v297
    %vm299 = vcmp.eq.f32.partialorder %v291, inf
    %v300 = vsel %vm299, %v291, %v298
    %vm301 = vcmp.eq.f32.partialorder %v291, 0.0
    %v302 = vand.u32 %v291, 2147483648
    %v303 = vsel %vm301, %v302, %v300
    %v305 = vsel %vm168, %v303, 0
    %307 = vmatpush.msra.mxu0 0.0
    %308 = vmatpush.msra.mxu0 0.0
    %309 = vmatpush.msra.mxu0 0.0
    %310 = vmatpush.msra.mxu0 0.0
    %311 = vmatpush.msra.mxu0 0.0
    %312 = vmatpush.msra.mxu0 0.0
    %313 = vmatpush.msra.mxu0 0.0
    %314 = vmatpush.msra.mxu0 0.0
    %315 = vmatpush.msra.mxu0 0.0
    %316 = vmatpush.msra.mxu0 0.0
    %317 = vmatpush.msra.mxu0 0.0
    %318 = vmatpush.msra.mxu0 0.0
    %319 = vmatpush.msra.mxu0 0.0
    %320 = vmatpush.msra.mxu0 0.0
    %321 = vmatpush.msra.mxu0 0.0
    %322 = vmatpush.msra.mxu0 1.0
    %323 = vmatmul.f32.gmra.mxu0 %v305
    %v324 = vpop.f32.mrf.mxu0
    %v325 = vadd.f32 0.0, %v324
    %326 = vdwg.mxu0
    %v327 = vrcp.pop %v325
    %v328 = vmul.f32 %v325, %v327
    %v329 = vsub.f32 1.0, %v328
    %v330 = vmul.f32 %v327, %v329
    %v331 = vadd.f32 %v327, %v330
    %vm332 = vweird.f32 %v325
    %vm333 = vweird.f32 %v327
    %vm334 = vmor %vm332, %vm333
    %v335 = vsel %vm334, %v327, %v331
    %v336 = vand.u32 2147483647, %v325
    %vm337 = vcmp.eq.f32.partialorder %v336, 8.507059e+37
    %v338 = vand.u32 %v325, 2147483648
    %v339 = vor.u32 1.1754944e-38, %v338
    %v340 = vsel %vm337, %v339, %v335
    %v341 = vmul.f32 %v340, 8.0
    %343 = vset.pattern.permute.xlu0 0
    %344 = vperm.xlu0 %343, %v341
    %v345 = vpop.permute.xlu0 %344
    %v347 = vmul.f32 %v303, %v345
    %v348 = vsel %vm168, %v212, inf
    %349 = vmin.xlane.f32.xlu0 %v348
    %v350 = vpop.xlane.xlu0 %349
    %v351 = vsub.f32 %v350, %v212
    %v352 = vsel %vm168, %v347, inf
    %353 = vmin.xlane.f32.xlu0 %v352
    %v354 = vpop.xlane.xlu0 %353
    %v355 = vsub.f32 %v354, %v347
    %v356 = vmul.f32 %v351, 1.442695
    %v357 = vpow.pop %v356
    %v358 = vmul.f32 %v355, 1.442695
    %v359 = vpow.pop %v358
    %v361 = vsel %vm168, %v357, 0
    %363 = vmatpush.msra.mxu0 0.0
    %364 = vmatpush.msra.mxu0 0.0
    %365 = vmatpush.msra.mxu0 0.0
    %366 = vmatpush.msra.mxu0 0.0
    %367 = vmatpush.msra.mxu0 0.0
    %368 = vmatpush.msra.mxu0 0.0
    %369 = vmatpush.msra.mxu0 0.0
    %370 = vmatpush.msra.mxu0 0.0
    %371 = vmatpush.msra.mxu0 0.0
    %372 = vmatpush.msra.mxu0 0.0
    %373 = vmatpush.msra.mxu0 0.0
    %374 = vmatpush.msra.mxu0 0.0
    %375 = vmatpush.msra.mxu0 0.0
    %376 = vmatpush.msra.mxu0 0.0
    %377 = vmatpush.msra.mxu0 0.0
    %378 = vmatpush.msra.mxu0 1.0
    %379 = vmatmul.f32.gmra.mxu0 %v361
    %v380 = vpop.f32.mrf.mxu0
    %v381 = vadd.f32 0.0, %v380
    %382 = vdwg.mxu0
    %v384 = vsel %vm168, %v359, 0
    %386 = vmatpush.msra.mxu0 0.0
    %387 = vmatpush.msra.mxu0 0.0
    %388 = vmatpush.msra.mxu0 0.0
    %389 = vmatpush.msra.mxu0 0.0
    %390 = vmatpush.msra.mxu0 0.0
    %391 = vmatpush.msra.mxu0 0.0
    %392 = vmatpush.msra.mxu0 0.0
    %393 = vmatpush.msra.mxu0 0.0
    %394 = vmatpush.msra.mxu0 0.0
    %395 = vmatpush.msra.mxu0 0.0
    %396 = vmatpush.msra.mxu0 0.0
    %397 = vmatpush.msra.mxu0 0.0
    %398 = vmatpush.msra.mxu0 0.0
    %399 = vmatpush.msra.mxu0 0.0
    %400 = vmatpush.msra.mxu0 0.0
    %401 = vmatpush.msra.mxu0 1.0
    %402 = vmatmul.f32.gmra.mxu0 %v384
    %v403 = vpop.f32.mrf.mxu0
    %v404 = vadd.f32 0.0, %v403
    %405 = vdwg.mxu0
    %v406 = vrcp.pop %v404
    %v407 = vmul.f32 %v404, %v406
    %v408 = vsub.f32 1.0, %v407
    %v409 = vmul.f32 %v406, %v408
    %v410 = vadd.f32 %v406, %v409
    %vm411 = vweird.f32 %v404
    %vm412 = vweird.f32 %v406
    %vm413 = vmor %vm411, %vm412
    %v414 = vsel %vm413, %v406, %v410
    %v415 = vand.u32 2147483647, %v404
    %vm416 = vcmp.eq.f32.partialorder %v415, 8.507059e+37
    %v417 = vand.u32 %v404, 2147483648
    %v418 = vor.u32 1.1754944e-38, %v417
    %v419 = vsel %vm416, %v418, %v414
    %v420 = vsub.f32 %v355, %v351
    %v421 = vmul.f32 %v359, %v420
    %v423 = vsel %vm168, %v421, 0
    %425 = vmatpush.msra.mxu0 0.0
    %426 = vmatpush.msra.mxu0 0.0
    %427 = vmatpush.msra.mxu0 0.0
    %428 = vmatpush.msra.mxu0 0.0
    %429 = vmatpush.msra.mxu0 0.0
    %430 = vmatpush.msra.mxu0 0.0
    %431 = vmatpush.msra.mxu0 0.0
    %432 = vmatpush.msra.mxu0 0.0
    %433 = vmatpush.msra.mxu0 0.0
    %434 = vmatpush.msra.mxu0 0.0
    %435 = vmatpush.msra.mxu0 0.0
    %436 = vmatpush.msra.mxu0 0.0
    %437 = vmatpush.msra.mxu0 0.0
    %438 = vmatpush.msra.mxu0 0.0
    %439 = vmatpush.msra.mxu0 0.0
    %440 = vmatpush.msra.mxu0 1.0
    %441 = vmatmul.f32.gmra.mxu0 %v423
    %v442 = vpop.f32.mrf.mxu0
    %v443 = vadd.f32 0.0, %v442
    %444 = vdwg.mxu0
    %v445 = vmul.f32 %v419, %v443
    %v446 = vlog2.pop %v381
    %v447 = vmul.f32 %v446, 0.6931472
    %v448 = vlog2.pop %v404
    %v449 = vmul.f32 %v448, 0.6931472
    %v450 = vsub.f32 %v447, %v449
    %v451 = vadd.f32 %v445, %v450
    %s452 = smul.u32 0, 8
    %v453 = vlaneseq
    %v454 = vshrl.u32 %v453, 7
    %v455 = vstv %s452
    %v456 = vadd.s32 %v455, %v454
    %vm457 = vcmp.lt.s32.totalorder %v456, 8
    %v458 = vsel %vm457, %v451, 0.0
    %vm459 = vcmask 7168
    %v460 = vsel %vm459, %v458, 0.0
    %461 = vadd.xlane.f32.xlu0 %v460
    %v462 = vpop.xlane.xlu0 %461
    %v463 = vrot.slane %v462, 4
    %v464 = vadd.f32 %v462, %v463
    %v465 = vrot.slane %v464, 2
    %v466 = vadd.f32 %v464, %v465
    %v467 = vrot.slane %v466, 1
    %v468 = vadd.f32 %v466, %v467
    %s469 = vtos %v468
    %v470 = vstv %s469
    %471 = vst [vmem:[#allocation10] sm:$0xff] %v470
    // Predicated region
    $region34: #{tpu_custom_call.1} parent=1 // pred_check
      _
    $region35: #{tpu_custom_call.1} parent=1 // pred_check_branch
      %473 = sbr.rel (0) target = $region37
    $region36: #{tpu_custom_call.1} parent=1 // pred_region
      %475 = vsyncadd [#allocation4], 0
      %s477 = sshll.u32 [#allocation10], 4
      %s478 = int_to_ptr.vmem [resolvable:$true] %s477
      %s479 = sshll.u32 %s4, 4
      %s480 = int_to_ptr.hbm [resolvable:$true] %s479
      %482 = dma.vmem_to_hbm [thread:$0]  %s478, 128, %s480, [#allocation4]
    $region37: #{tpu_custom_call.1} parent=1 // pred_fallthru
      _
    // Predicated region
    $region38: #{tpu_custom_call.1} parent=1 // pred_check
      _
    $region39: #{tpu_custom_call.1} parent=1 // pred_check_branch
      %484 = sbr.rel (0) target = $region41
    $region40: #{tpu_custom_call.1} parent=1 // pred_region
      %486 = dma.done [#allocation4], 128
    $region41: #{tpu_custom_call.1} parent=1 // pred_fallthru
      _
    %487 = vsyncpa [#allocation3], 1
    %488 = vsyncpa [#allocation6], 1
    %489 = vsyncpa [#allocation9], 1
    %490 = vsyncpa [#allocation4], 1

</llo_original>
